<compile_context>
chip_gen: v6e
topology: v6e:2x2x1
jax: 0.10.0
libtpu: 0.0.40
codegen_flags: <defaults>
</compile_context>

<pallas_src>
import functools

import jax
import jax.numpy as jnp
from jax.experimental import pallas as pl
from jax.experimental.pallas import tpu as pltpu


# ----------------------------------------------------------------------------
# Kernel 1: separable Sobel -> edge magnitude + |cos(theta)| + |sin(theta)|
#           (== F.conv2d(img, sobel_x/_y, valid) + sqrt + atan2 + F.pad(..., 0))
# ----------------------------------------------------------------------------
def _sobel_edge_kernel(x_ref, e_ref, cos_ref, sin_ref):
    img = x_ref[0, :, :]  # (H, W) float32
    H, W = img.shape

    # Separable 3x3 Sobel: 6 XLU rolls total (vs 12 naive).
    #   gx kernel a = [1,2,1]^T (x) [-1,0,1];  gy kernel b = [1,0,-1]^T (x) [1,2,1]
    up = jnp.roll(img, 1, axis=0)      # img[i-1, j]
    down = jnp.roll(img, -1, axis=0)   # img[i+1, j]
    s = up + 2.0 * img + down          # vertical smooth  [1,2,1]^T
    d = up - down                      # vertical diff    [1,0,-1]^T
    gx = jnp.roll(s, -1, axis=1) - jnp.roll(s, 1, axis=1)             # s[i,j+1]-s[i,j-1]
    gy = jnp.roll(d, 1, axis=1) + 2.0 * d + jnp.roll(d, -1, axis=1)   # d[i,j-1]+2d+d[i,j+1]

    # Zero the 1-pixel border (== F.pad(valid_conv, (1,1,1,1), 'constant', 0)); this
    # also kills the circular-wrap garbage from the rolls.
    r = jax.lax.broadcasted_iota(jnp.int32, (H, W), 0)
    c = jax.lax.broadcasted_iota(jnp.int32, (H, W), 1)
    interior = (r >= 1) & (r <= H - 2) & (c >= 1) & (c <= W - 2)
    gx = jnp.where(interior, gx, 0.0)
    gy = jnp.where(interior, gy, 0.0)

    e = jnp.sqrt(gx * gx + gy * gy)
    # Fused trig: |cos(atan2(gy,gx))| = |gx|/e, |sin| = |gy|/e. EUP reciprocal is ~free.
    # TODO(synk): at gx=gy=0 this yields (0,0) whereas atan2 semantics give (1,0);
    # those pixels have edges==0 so they are never selected as anchors.
    inv = pl.reciprocal(e + 1e-12, approx=True)
    e_ref[0, :, :] = e
    cos_ref[0, :, :] = jnp.abs(gx) * inv
    sin_ref[0, :, :] = jnp.abs(gy) * inv


def sobel_edges_pallas(planes):
    """planes: (N, H, W) f32 -> (edges, |cos th|, |sin th|), each (N, H, W), zero border."""
    n, h, w = planes.shape
    spec = pl.BlockSpec((1, h, w), lambda i: (i, 0, 0))
    out_shape = tuple(jax.ShapeDtypeStruct((n, h, w), jnp.float32) for _ in range(3))
    # 1 input + 3 outputs, double-buffered -> ~8 plane buffers; keep within scoped VMEM.
    # TODO(synk): for very large planes (>= ~2 MiB each, e.g. 1080p on v7x's 64 MiB VMEM)
    # this full-plane block should be H-tiled with a 1-row halo.
    vmem_limit = int(min(64 << 20, max(16 << 20, 10 * h * w * 4)))
    return pl.pallas_call(
        _sobel_edge_kernel,
        grid=(n,),
        in_specs=[spec],
        out_specs=(spec, spec, spec),
        out_shape=out_shape,
        compiler_params=pltpu.CompilerParams(
            dimension_semantics=("parallel",),
            vmem_limit_bytes=vmem_limit,
        ),
    )(planes)


# ----------------------------------------------------------------------------
# Kernel 2: pairwise ranking loss over sampled (A, B) pairs, gridded over the
#           pair axis with a resident SMEM scalar accumulator.
# ----------------------------------------------------------------------------
def _pair_loss_kernel(iA_ref, iB_ref, tA_ref, tB_ref, mA_ref, mB_ref, o_ref, acc_ref,
                      *, sigma, alpha, inv_total):
    step = pl.program_id(0)

    @pl.when(step == 0)
    def _():
        acc_ref[0] = jnp.float32(0.0)

    iA = iA_ref[...]
    iB = iB_ref[...]
    tA = tA_ref[...]
    tB = tB_ref[...]
    cmask = mA_ref[...] * mB_ref[...]

    ratio = (tA + 1e-6) / (tB + 1e-6)
    hi = jnp.float32(1.0 + sigma)
    lo = jnp.float32(1.0 / (1.0 + sigma))
    mask_eq = ((ratio < hi) & (ratio > lo)).astype(jnp.float32)
    labels = jnp.where(ratio >= hi, 1.0, 0.0) + jnp.where(ratio <= lo, -1.0, 0.0)

    diff = iA - iB
    equal_loss = diff * diff * mask_eq * cmask

    # stable softplus: log(1 + exp(x)) = max(x, 0) + log(1 + exp(-|x|))
    x = (iB - iA) * labels
    softplus = jnp.maximum(x, 0.0) + jnp.log(1.0 + jnp.exp(-jnp.abs(x)))
    unequal_loss = softplus * (1.0 - mask_eq) * cmask

    # fold alpha into the partial sum; the per-image /L and /n become one scalar scale.
    acc_ref[0] = acc_ref[0] + jnp.sum(alpha * equal_loss + unequal_loss)
    o_ref[0] = acc_ref[0] * inv_total


def _choose_pair_block(L):
    if L <= 2048:
        return L
    for tl in (2048, 1024, 512, 256, 128):
        if L % tl == 0:
            return tl
    return L


def pair_ranking_loss_pallas(iA, iB, tA, tB, mA, mB, sigma, alpha):
    n, L = iA.shape
    tl = _choose_pair_block(L)
    kernel = functools.partial(
        _pair_loss_kernel,
        sigma=float(sigma),
        alpha=float(alpha),
        inv_total=float(1.0 / (L * n)),
    )
    pair_spec = pl.BlockSpec((n, tl), lambda l: (0, l))
    out = pl.pallas_call(
        kernel,
        grid=(L // tl,),
        in_specs=[pair_spec] * 6,
        out_specs=pl.BlockSpec((1,), lambda l: (0,),
                               memory_space=pltpu.MemorySpace.SMEM),
        out_shape=jax.ShapeDtypeStruct((1,), jnp.float32),
        scratch_shapes=[pltpu.SMEM((1,), jnp.float32)],
        compiler_params=pltpu.CompilerParams(dimension_semantics=("arbitrary",)),
    )(iA, iB, tA, tB, mA, mB)
    return out[0]


# ----------------------------------------------------------------------------
# Sampling glue (plain JAX, vmapped over the batch). Data-dependent-shape torch
# ops (nonzero, masked_select, randperm) are emulated with a fixed capacity S and
# a cumsum + searchsorted "k-th set bit" lookup (no full-plane argsort).
# ----------------------------------------------------------------------------
def _edge_guided_sampling(key, inp, tgt, edges, abs_cos, abs_sin, msk, *, h, w, S):
    # TODO(synk): torch uses sample_num = (# edge pixels), a data-dependent shape;
    # here S is a fixed capacity (anchors still sampled only among true edge pixels).
    edges_max = jnp.max(edges)
    edges_mask = edges >= edges_max * 0.1
    csum = jnp.cumsum(edges_mask.astype(jnp.int32))
    minlen = csum[-1]

    k_idx, k_dist = jax.random.split(key)
    ranks = jax.random.randint(k_idx, (S,), 0, jnp.maximum(minlen, 1))
    # position of the (rank+1)-th edge pixel == edges_mask.nonzero()[rank]
    edges_loc = jnp.minimum(
        jnp.searchsorted(csum, ranks + 1, side="left"), h * w - 1).astype(jnp.int32)
    cos_a = abs_cos[edges_loc]
    sin_a = abs_sin[edges_loc]

    row_anchors = edges_loc // w
    col_anchors = edges_loc % w

    dist = jax.random.randint(k_dist, (4, S), 2, 31).astype(jnp.float32)
    sign = jnp.concatenate([-jnp.ones((2, S), jnp.float32),
                            jnp.ones((2, S), jnp.float32)], axis=0)
    dist = dist * sign

    col = col_anchors[None, :] + jnp.round(dist * cos_a[None, :]).astype(jnp.int32)
    row = row_anchors[None, :] + jnp.round(dist * sin_a[None, :]).astype(jnp.int32)
    col = jnp.clip(col, 0, w - 1)
    row = jnp.clip(row, 0, h - 1)

    flat = row * w + col                            # sub2ind, (4, S)
    A = jnp.concatenate([flat[0], flat[1], flat[2]])
    B = jnp.concatenate([flat[1], flat[2], flat[3]])
    return inp[A], inp[B], tgt[A], tgt[B], msk[A], msk[B]


def _random_sampling(key, inp, tgt, msk, *, threshold, S):
    # TODO(synk): torch uses randperm over a dynamic-length masked_select
    # (without replacement); fixed shapes force with-replacement sampling.
    valid = tgt > threshold
    csum = jnp.cumsum(valid.astype(jnp.int32))
    nvalid = csum[-1]
    ranks = jax.random.randint(key, (2 * S,), 0, jnp.maximum(nvalid, 1))
    pos = jnp.minimum(
        jnp.searchsorted(csum, ranks + 1, side="left"), tgt.shape[0] - 1).astype(jnp.int32)
    pA, pB = pos[0::2], pos[1::2]
    return inp[pA], inp[pB], tgt[pA], tgt[pB], msk[pA], msk[pB]


# ----------------------------------------------------------------------------
# Forward (jitted)
# ----------------------------------------------------------------------------
def _forward_impl(key, inputs, targets, images, masks, *, sigma, alpha, mask_value,
                  sample_num):
    n, c, h, w = targets.shape
    if masks is None:
        masks = targets > mask_value

    # getEdge: Sobel on channel 0 (the c==3 branch; identical for c==1).
    img0 = images[:, 0, :, :].astype(jnp.float32)          # (n, h, w)
    edges, abs_cos, abs_sin = sobel_edges_pallas(img0)

    inputs_f = inputs.reshape(n, -1).astype(jnp.float32)
    targets_f = targets.reshape(n, -1).astype(jnp.float32)
    masks_f = masks.reshape(n, -1).astype(jnp.float32)
    edges_f = edges.reshape(n, -1)
    cos_f = abs_cos.reshape(n, -1)
    sin_f = abs_sin.reshape(n, -1)

    S = sample_num
    keys = jax.random.split(key, 2 * n)
    keys_e, keys_r = keys[0::2], keys[1::2]

    edge_sampler = functools.partial(_edge_guided_sampling, h=h, w=w, S=S)
    rand_sampler = functools.partial(_random_sampling, threshold=mask_value, S=S)
    eA, eB, etA, etB, emA, emB = jax.vmap(edge_sampler)(
        keys_e, inputs_f, targets_f, edges_f, cos_f, sin_f, masks_f)
    rA, rB, rtA, rtB, rmA, rmB = jax.vmap(rand_sampler)(
        keys_r, inputs_f, targets_f, masks_f)

    iA = jnp.concatenate([eA, rA], axis=1)   # (n, 4*S), 4*S multiple of 128
    iB = jnp.concatenate([eB, rB], axis=1)
    tA = jnp.concatenate([etA, rtA], axis=1)
    tB = jnp.concatenate([etB, rtB], axis=1)
    mA = jnp.concatenate([emA, rmA], axis=1)
    mB = jnp.concatenate([emB, rmB], axis=1)

    return pair_ranking_loss_pallas(iA, iB, tA, tB, mA, mB, sigma, alpha)


class EdgeguidedRankingLossPallas:
    def __init__(self, point_pairs=10000, sigma=0.15, alpha=1.0, mask_value=1e-8,
                 sample_num=64):
        self.point_pairs = point_pairs  # kept for parity; unused by forward (as in torch)
        self.sigma = float(sigma)
        self.alpha = float(alpha)
        self.mask_value = float(mask_value)
        # Round S up to a multiple of 32 so the pair axis (4*S) is a multiple of 128
        # (lane-dense loads / unmasked vregs in the pair-loss kernel).
        self.sample_num = max(32, -(-int(sample_num) // 32) * 32)
        self._fwd = jax.jit(functools.partial(
            _forward_impl, sigma=self.sigma, alpha=self.alpha,
            mask_value=self.mask_value, sample_num=self.sample_num))

    def __call__(self, key, inputs, targets, images, masks=None):
        return self._fwd(key, inputs, targets, images, masks)


if __name__ == "__main__":
    key = jax.random.PRNGKey(0)
    k_in, k_tgt, k_img, k_samp = jax.random.split(key, 4)

    N, H, W = 2, 16, 16
    inputs = jax.random.uniform(k_in, (N, 1, H, W), jnp.float32)
    targets = jax.random.uniform(k_tgt, (N, 1, H, W), jnp.float32)
    images = jax.random.uniform(k_img, (N, 3, H, W), jnp.float32)

    loss_mod = EdgeguidedRankingLossPallas(point_pairs=10000, sigma=0.15, alpha=1.0,
                                           mask_value=1e-8, sample_num=64)
    loss = loss_mod(k_samp, inputs, targets, images)
    jax.block_until_ready(loss)
    assert loss.shape == () and loss.dtype == jnp.float32
    assert bool(jnp.isfinite(loss))
    print("KERNEL_OK")
</pallas_src>

<mosaic_0001>
module attributes {stable_mosaic.version = 11 : i64} {
  func.func @_sobel_edge_kernel(%arg0: i32, %arg1: memref<1x16x16xf32, #tpu.memory_space<vmem>>, %arg2: memref<1x16x16xf32, #tpu.memory_space<vmem>>, %arg3: memref<1x16x16xf32, #tpu.memory_space<vmem>>, %arg4: memref<1x16x16xf32, #tpu.memory_space<vmem>>) attributes {dimension_semantics = [#tpu.dimension_semantics<parallel>], iteration_bounds = array<i64: 2>, scalar_prefetch = 0 : i64, scratch_operands = 0 : i64, tpu.core_type = #tpu.core_type<tc>, window_params = [{transform_indices = @transform_0, window_bounds = array<i64: 1, 16, 16>}, {transform_indices = @transform_1, window_bounds = array<i64: 1, 16, 16>}, {transform_indices = @transform_2, window_bounds = array<i64: 1, 16, 16>}, {transform_indices = @transform_3, window_bounds = array<i64: 1, 16, 16>}]} {
    %c0 = arith.constant 0 : index
    %c0_0 = arith.constant 0 : index
    %c0_1 = arith.constant 0 : index
    %0 = vector.load %arg1[%c0, %c0_0, %c0_1] : memref<1x16x16xf32, #tpu.memory_space<vmem>>, vector<1x16x16xf32>
    %1 = vector.shape_cast %0 : vector<1x16x16xf32> to vector<16x16xf32>
    %2 = vector.extract_strided_slice %1 {offsets = [15, 0], sizes = [1, 16], strides = [1, 1]} : vector<16x16xf32> to vector<1x16xf32>
    %3 = vector.extract_strided_slice %1 {offsets = [0, 0], sizes = [15, 16], strides = [1, 1]} : vector<16x16xf32> to vector<15x16xf32>
    %4 = tpu.concatenate %2, %3 in 0 : vector<1x16xf32>, vector<15x16xf32> -> vector<16x16xf32>
    %5 = vector.extract_strided_slice %1 {offsets = [1, 0], sizes = [15, 16], strides = [1, 1]} : vector<16x16xf32> to vector<15x16xf32>
    %6 = vector.extract_strided_slice %1 {offsets = [0, 0], sizes = [1, 16], strides = [1, 1]} : vector<16x16xf32> to vector<1x16xf32>
    %7 = tpu.concatenate %5, %6 in 0 : vector<15x16xf32>, vector<1x16xf32> -> vector<16x16xf32>
    %cst = arith.constant 2.000000e+00 : f32
    %8 = vector.broadcast %cst : f32 to vector<16x16xf32>
    %9 = arith.mulf %8, %1 : vector<16x16xf32>
    %10 = arith.addf %4, %9 : vector<16x16xf32>
    %11 = arith.addf %10, %7 : vector<16x16xf32>
    %12 = arith.subf %4, %7 : vector<16x16xf32>
    %13 = vector.extract_strided_slice %11 {offsets = [0, 1], sizes = [16, 15], strides = [1, 1]} : vector<16x16xf32> to vector<16x15xf32>
    %14 = vector.extract_strided_slice %11 {offsets = [0, 0], sizes = [16, 1], strides = [1, 1]} : vector<16x16xf32> to vector<16x1xf32>
    %15 = tpu.concatenate %13, %14 in 1 : vector<16x15xf32>, vector<16x1xf32> -> vector<16x16xf32>
    %16 = vector.extract_strided_slice %11 {offsets = [0, 15], sizes = [16, 1], strides = [1, 1]} : vector<16x16xf32> to vector<16x1xf32>
    %17 = vector.extract_strided_slice %11 {offsets = [0, 0], sizes = [16, 15], strides = [1, 1]} : vector<16x16xf32> to vector<16x15xf32>
    %18 = tpu.concatenate %16, %17 in 1 : vector<16x1xf32>, vector<16x15xf32> -> vector<16x16xf32>
    %19 = arith.subf %15, %18 : vector<16x16xf32>
    %20 = vector.extract_strided_slice %12 {offsets = [0, 15], sizes = [16, 1], strides = [1, 1]} : vector<16x16xf32> to vector<16x1xf32>
    %21 = vector.extract_strided_slice %12 {offsets = [0, 0], sizes = [16, 15], strides = [1, 1]} : vector<16x16xf32> to vector<16x15xf32>
    %22 = tpu.concatenate %20, %21 in 1 : vector<16x1xf32>, vector<16x15xf32> -> vector<16x16xf32>
    %cst_2 = arith.constant 2.000000e+00 : f32
    %23 = vector.broadcast %cst_2 : f32 to vector<16x16xf32>
    %24 = arith.mulf %23, %12 : vector<16x16xf32>
    %25 = arith.addf %22, %24 : vector<16x16xf32>
    %26 = vector.extract_strided_slice %12 {offsets = [0, 1], sizes = [16, 15], strides = [1, 1]} : vector<16x16xf32> to vector<16x15xf32>
    %27 = vector.extract_strided_slice %12 {offsets = [0, 0], sizes = [16, 1], strides = [1, 1]} : vector<16x16xf32> to vector<16x1xf32>
    %28 = tpu.concatenate %26, %27 in 1 : vector<16x15xf32>, vector<16x1xf32> -> vector<16x16xf32>
    %29 = arith.addf %25, %28 : vector<16x16xf32>
    %30 = tpu.iota {dimensions = array<i32: 0>} : vector<16x16xi32>
    %31 = tpu.iota {dimensions = array<i32: 1>} : vector<16x16xi32>
    %c1_i32 = arith.constant 1 : i32
    %32 = vector.broadcast %c1_i32 : i32 to vector<16x16xi32>
    %33 = arith.cmpi sge, %30, %32 : vector<16x16xi32>
    %c14_i32 = arith.constant 14 : i32
    %34 = vector.broadcast %c14_i32 : i32 to vector<16x16xi32>
    %35 = arith.cmpi sle, %30, %34 : vector<16x16xi32>
    %36 = arith.andi %33, %35 : vector<16x16xi1>
    %c1_i32_3 = arith.constant 1 : i32
    %37 = vector.broadcast %c1_i32_3 : i32 to vector<16x16xi32>
    %38 = arith.cmpi sge, %31, %37 : vector<16x16xi32>
    %39 = arith.andi %36, %38 : vector<16x16xi1>
    %c14_i32_4 = arith.constant 14 : i32
    %40 = vector.broadcast %c14_i32_4 : i32 to vector<16x16xi32>
    %41 = arith.cmpi sle, %31, %40 : vector<16x16xi32>
    %42 = arith.andi %39, %41 : vector<16x16xi1>
    %cst_5 = arith.constant 0.000000e+00 : f32
    %43 = vector.broadcast %cst_5 : f32 to vector<16x16xf32>
    %44 = arith.select %42, %19, %43 : vector<16x16xi1>, vector<16x16xf32>
    %cst_6 = arith.constant 0.000000e+00 : f32
    %45 = vector.broadcast %cst_6 : f32 to vector<16x16xf32>
    %46 = arith.select %42, %29, %45 : vector<16x16xi1>, vector<16x16xf32>
    %47 = arith.mulf %44, %44 : vector<16x16xf32>
    %48 = arith.mulf %46, %46 : vector<16x16xf32>
    %49 = arith.addf %47, %48 : vector<16x16xf32>
    %50 = math.sqrt %49 : vector<16x16xf32>
    %cst_7 = arith.constant 9.99999996E-13 : f32
    %51 = vector.broadcast %cst_7 : f32 to vector<16x16xf32>
    %52 = arith.addf %50, %51 : vector<16x16xf32>
    %53 = tpu.reciprocal %52 {approx = true} : vector<16x16xf32> -> vector<16x16xf32>
    %c0_8 = arith.constant 0 : index
    %c0_9 = arith.constant 0 : index
    %c0_10 = arith.constant 0 : index
    %54 = vector.load %arg2[%c0_8, %c0_9, %c0_10] : memref<1x16x16xf32, #tpu.memory_space<vmem>>, vector<1x16x16xf32>
    %55 = vector.shape_cast %54 : vector<1x16x16xf32> to vector<16x16xf32>
    %56 = vector.shape_cast %50 : vector<16x16xf32> to vector<1x16x16xf32>
    tpu.vector_store %arg2[%c0_8, %c0_9, %c0_10], %56 {strides = array<i32>} : memref<1x16x16xf32, #tpu.memory_space<vmem>>, vector<1x16x16xf32>,
    %57 = math.absf %44 : vector<16x16xf32>
    %58 = arith.mulf %57, %53 : vector<16x16xf32>
    %c0_11 = arith.constant 0 : index
    %c0_12 = arith.constant 0 : index
    %c0_13 = arith.constant 0 : index
    %59 = vector.load %arg3[%c0_11, %c0_12, %c0_13] : memref<1x16x16xf32, #tpu.memory_space<vmem>>, vector<1x16x16xf32>
    %60 = vector.shape_cast %59 : vector<1x16x16xf32> to vector<16x16xf32>
    %61 = vector.shape_cast %58 : vector<16x16xf32> to vector<1x16x16xf32>
    tpu.vector_store %arg3[%c0_11, %c0_12, %c0_13], %61 {strides = array<i32>} : memref<1x16x16xf32, #tpu.memory_space<vmem>>, vector<1x16x16xf32>,
    %62 = math.absf %46 : vector<16x16xf32>
    %63 = arith.mulf %62, %53 : vector<16x16xf32>
    %c0_14 = arith.constant 0 : index
    %c0_15 = arith.constant 0 : index
    %c0_16 = arith.constant 0 : index
    %64 = vector.load %arg4[%c0_14, %c0_15, %c0_16] : memref<1x16x16xf32, #tpu.memory_space<vmem>>, vector<1x16x16xf32>
    %65 = vector.shape_cast %64 : vector<1x16x16xf32> to vector<16x16xf32>
    %66 = vector.shape_cast %63 : vector<16x16xf32> to vector<1x16x16xf32>
    tpu.vector_store %arg4[%c0_14, %c0_15, %c0_16], %66 {strides = array<i32>} : memref<1x16x16xf32, #tpu.memory_space<vmem>>, vector<1x16x16xf32>,
    return
  }
  func.func @transform_0(%arg0: i32) -> (i32, i32, i32) {
    %c0_i32 = arith.constant 0 : i32
    %c0_i32_0 = arith.constant 0 : i32
    %c0_i32_1 = arith.constant 0 : i32
    return %arg0, %c0_i32, %c0_i32_0 : i32, i32, i32
  }
  func.func @transform_1(%arg0: i32) -> (i32, i32, i32) {
    %c0_i32 = arith.constant 0 : i32
    %c0_i32_0 = arith.constant 0 : i32
    %c0_i32_1 = arith.constant 0 : i32
    return %arg0, %c0_i32, %c0_i32_0 : i32, i32, i32
  }
  func.func @transform_2(%arg0: i32) -> (i32, i32, i32) {
    %c0_i32 = arith.constant 0 : i32
    %c0_i32_0 = arith.constant 0 : i32
    %c0_i32_1 = arith.constant 0 : i32
    return %arg0, %c0_i32, %c0_i32_0 : i32, i32, i32
  }
  func.func @transform_3(%arg0: i32) -> (i32, i32, i32) {
    %c0_i32 = arith.constant 0 : i32
    %c0_i32_0 = arith.constant 0 : i32
    %c0_i32_1 = arith.constant 0 : i32
    return %arg0, %c0_i32, %c0_i32_0 : i32, i32, i32
  }
}

module attributes {stable_mosaic.version = 11 : i64} {
  func.func @_pair_loss_kernel(%arg0: i32, %arg1: memref<2x256xf32, #tpu.memory_space<vmem>>, %arg2: memref<2x256xf32, #tpu.memory_space<vmem>>, %arg3: memref<2x256xf32, #tpu.memory_space<vmem>>, %arg4: memref<2x256xf32, #tpu.memory_space<vmem>>, %arg5: memref<2x256xf32, #tpu.memory_space<vmem>>, %arg6: memref<2x256xf32, #tpu.memory_space<vmem>>, %arg7: memref<1xf32, #tpu.memory_space<smem>>, %arg8: memref<1xf32, #tpu.memory_space<smem>>) attributes {dimension_semantics = [#tpu.dimension_semantics<arbitrary>], iteration_bounds = array<i64: 1>, scalar_prefetch = 0 : i64, scratch_operands = 1 : i64, tpu.core_type = #tpu.core_type<tc>, window_params = [{transform_indices = @transform_0, window_bounds = array<i64: 2, 256>}, {transform_indices = @transform_1, window_bounds = array<i64: 2, 256>}, {transform_indices = @transform_2, window_bounds = array<i64: 2, 256>}, {transform_indices = @transform_3, window_bounds = array<i64: 2, 256>}, {transform_indices = @transform_4, window_bounds = array<i64: 2, 256>}, {transform_indices = @transform_5, window_bounds = array<i64: 2, 256>}, {transform_indices = @transform_6, window_bounds = array<i64: 1>}]} {
    %c0_i32 = arith.constant 0 : i32
    %0 = arith.cmpi eq, %arg0, %c0_i32 : i32
    %1 = arith.extui %0 : i1 to i32
    %c0_i32_0 = arith.constant 0 : i32
    %2 = arith.cmpi ne, %1, %c0_i32_0 : i32
    scf.if %2 {
      %cst_32 = arith.constant 0.000000e+00 : f32
      %c0_33 = arith.constant 0 : index
      %66 = memref.load %arg8[%c0_33] : memref<1xf32, #tpu.memory_space<smem>>
      memref.store %cst_32, %arg8[%c0_33] : memref<1xf32, #tpu.memory_space<smem>>
    } else {
    }
    %c0 = arith.constant 0 : index
    %c0_1 = arith.constant 0 : index
    %3 = vector.load %arg1[%c0, %c0_1] : memref<2x256xf32, #tpu.memory_space<vmem>>, vector<2x256xf32>
    %c0_2 = arith.constant 0 : index
    %c0_3 = arith.constant 0 : index
    %4 = vector.load %arg2[%c0_2, %c0_3] : memref<2x256xf32, #tpu.memory_space<vmem>>, vector<2x256xf32>
    %c0_4 = arith.constant 0 : index
    %c0_5 = arith.constant 0 : index
    %5 = vector.load %arg3[%c0_4, %c0_5] : memref<2x256xf32, #tpu.memory_space<vmem>>, vector<2x256xf32>
    %c0_6 = arith.constant 0 : index
    %c0_7 = arith.constant 0 : index
    %6 = vector.load %arg4[%c0_6, %c0_7] : memref<2x256xf32, #tpu.memory_space<vmem>>, vector<2x256xf32>
    %c0_8 = arith.constant 0 : index
    %c0_9 = arith.constant 0 : index
    %7 = vector.load %arg5[%c0_8, %c0_9] : memref<2x256xf32, #tpu.memory_space<vmem>>, vector<2x256xf32>
    %c0_10 = arith.constant 0 : index
    %c0_11 = arith.constant 0 : index
    %8 = vector.load %arg6[%c0_10, %c0_11] : memref<2x256xf32, #tpu.memory_space<vmem>>, vector<2x256xf32>
    %9 = arith.mulf %7, %8 : vector<2x256xf32>
    %cst = arith.constant 9.99999997E-7 : f32
    %10 = vector.broadcast %cst : f32 to vector<2x256xf32>
    %11 = arith.addf %5, %10 : vector<2x256xf32>
    %cst_12 = arith.constant 9.99999997E-7 : f32
    %12 = vector.broadcast %cst_12 : f32 to vector<2x256xf32>
    %13 = arith.addf %6, %12 : vector<2x256xf32>
    %14 = arith.divf %11, %13 : vector<2x256xf32>
    %cst_13 = arith.constant 1.150000e+00 : f32
    %15 = vector.broadcast %cst_13 : f32 to vector<2x256xf32>
    %16 = arith.cmpf olt, %14, %15 : vector<2x256xf32>
    %cst_14 = arith.constant 0.869565188 : f32
    %17 = vector.broadcast %cst_14 : f32 to vector<2x256xf32>
    %18 = arith.cmpf ogt, %14, %17 : vector<2x256xf32>
    %19 = arith.andi %16, %18 : vector<2x256xi1>
    %20 = arith.extui %19 : vector<2x256xi1> to vector<2x256xi32>
    %21 = arith.sitofp %20 : vector<2x256xi32> to vector<2x256xf32>
    %cst_15 = arith.constant 1.150000e+00 : f32
    %22 = vector.broadcast %cst_15 : f32 to vector<2x256xf32>
    %23 = arith.cmpf oge, %14, %22 : vector<2x256xf32>
    %cst_16 = arith.constant 1.000000e+00 : f32
    %cst_17 = arith.constant 0.000000e+00 : f32
    %24 = vector.broadcast %cst_16 : f32 to vector<2x256xf32>
    %25 = vector.broadcast %cst_17 : f32 to vector<2x256xf32>
    %26 = arith.select %23, %24, %25 : vector<2x256xi1>, vector<2x256xf32>
    %cst_18 = arith.constant 0.869565188 : f32
    %27 = vector.broadcast %cst_18 : f32 to vector<2x256xf32>
    %28 = arith.cmpf ole, %14, %27 : vector<2x256xf32>
    %cst_19 = arith.constant -1.000000e+00 : f32
    %cst_20 = arith.constant 0.000000e+00 : f32
    %29 = vector.broadcast %cst_19 : f32 to vector<2x256xf32>
    %30 = vector.broadcast %cst_20 : f32 to vector<2x256xf32>
    %31 = arith.select %28, %29, %30 : vector<2x256xi1>, vector<2x256xf32>
    %32 = arith.addf %26, %31 : vector<2x256xf32>
    %33 = arith.subf %3, %4 : vector<2x256xf32>
    %34 = arith.mulf %33, %33 : vector<2x256xf32>
    %35 = arith.mulf %34, %21 : vector<2x256xf32>
    %36 = arith.mulf %35, %9 : vector<2x256xf32>
    %37 = arith.subf %4, %3 : vector<2x256xf32>
    %38 = arith.mulf %37, %32 : vector<2x256xf32>
    %cst_21 = arith.constant 0.000000e+00 : f32
    %39 = vector.broadcast %cst_21 : f32 to vector<2x256xf32>
    %40 = arith.maximumf %38, %39 : vector<2x256xf32>
    %41 = math.absf %38 : vector<2x256xf32>
    %cst_22 = arith.constant 0.000000e+00 : f32
    %42 = vector.broadcast %cst_22 : f32 to vector<2x256xf32>
    %43 = arith.subf %42, %41 : vector<2x256xf32>
    %44 = math.exp %43 : vector<2x256xf32>
    %cst_23 = arith.constant 1.000000e+00 : f32
    %45 = vector.broadcast %cst_23 : f32 to vector<2x256xf32>
    %46 = arith.addf %45, %44 : vector<2x256xf32>
    %47 = math.log %46 : vector<2x256xf32>
    %48 = arith.addf %40, %47 : vector<2x256xf32>
    %cst_24 = arith.constant 1.000000e+00 : f32
    %49 = vector.broadcast %cst_24 : f32 to vector<2x256xf32>
    %50 = arith.subf %49, %21 : vector<2x256xf32>
    %51 = arith.mulf %48, %50 : vector<2x256xf32>
    %52 = arith.mulf %51, %9 : vector<2x256xf32>
    %c0_25 = arith.constant 0 : index
    %53 = memref.load %arg8[%c0_25] : memref<1xf32, #tpu.memory_space<smem>>
    %cst_26 = arith.constant 1.000000e+00 : f32
    %54 = vector.broadcast %cst_26 : f32 to vector<2x256xf32>
    %55 = arith.mulf %54, %36 : vector<2x256xf32>
    %56 = arith.addf %55, %52 : vector<2x256xf32>
    %57 = vector.shape_cast %56 : vector<2x256xf32> to vector<1x2x256xf32>
    %cst_27 = arith.constant dense<0.000000e+00> : vector<1xf32>
    %58 = vector.multi_reduction <add>, %57, %cst_27 [1, 2] : vector<1x2x256xf32> to vector<1xf32>
    %59 = vector.shape_cast %58 : vector<1xf32> to vector<1x1x1xf32>
    %60 = vector.extract %59[0, 0, 0] : f32 from vector<1x1x1xf32>
    %61 = arith.addf %53, %60 : f32
    %c0_28 = arith.constant 0 : index
    %62 = memref.load %arg8[%c0_28] : memref<1xf32, #tpu.memory_space<smem>>
    memref.store %61, %arg8[%c0_28] : memref<1xf32, #tpu.memory_space<smem>>
    %c0_29 = arith.constant 0 : index
    %63 = memref.load %arg8[%c0_29] : memref<1xf32, #tpu.memory_space<smem>>
    %cst_30 = arith.constant 0.001953125 : f32
    %64 = arith.mulf %63, %cst_30 : f32
    %c0_31 = arith.constant 0 : index
    %65 = memref.load %arg7[%c0_31] : memref<1xf32, #tpu.memory_space<smem>>
    memref.store %64, %arg7[%c0_31] : memref<1xf32, #tpu.memory_space<smem>>
    return
  }
  func.func @transform_0(%arg0: i32) -> (i32, i32) {
    %c0_i32 = arith.constant 0 : i32
    %c0_i32_0 = arith.constant 0 : i32
    return %c0_i32, %arg0 : i32, i32
  }
  func.func @transform_1(%arg0: i32) -> (i32, i32) {
    %c0_i32 = arith.constant 0 : i32
    %c0_i32_0 = arith.constant 0 : i32
    return %c0_i32, %arg0 : i32, i32
  }
  func.func @transform_2(%arg0: i32) -> (i32, i32) {
    %c0_i32 = arith.constant 0 : i32
    %c0_i32_0 = arith.constant 0 : i32
    return %c0_i32, %arg0 : i32, i32
  }
  func.func @transform_3(%arg0: i32) -> (i32, i32) {
    %c0_i32 = arith.constant 0 : i32
    %c0_i32_0 = arith.constant 0 : i32
    return %c0_i32, %arg0 : i32, i32
  }
  func.func @transform_4(%arg0: i32) -> (i32, i32) {
    %c0_i32 = arith.constant 0 : i32
    %c0_i32_0 = arith.constant 0 : i32
    return %c0_i32, %arg0 : i32, i32
  }
  func.func @transform_5(%arg0: i32) -> (i32, i32) {
    %c0_i32 = arith.constant 0 : i32
    %c0_i32_0 = arith.constant 0 : i32
    return %c0_i32, %arg0 : i32, i32
  }
  func.func @transform_6(%arg0: i32) -> i32 {
    %c0_i32 = arith.constant 0 : i32
    %c0_i32_0 = arith.constant 0 : i32
    return %c0_i32 : i32
  }
}

</mosaic_0001>

<llo_original>
// kernel: custom-call.32
$region0: #{custom-call.32}
  %s0 = inlined_call_operand.vmem [shape: u32[2,64], index: 0, kind: output, shape index: {}]

// kernel: squeeze.23
$region0: #{squeeze.23}
  %s0 = inlined_call_operand.vmem [shape: s32[128], index: 0, kind: input, shape index: {}]
  %s1 = inlined_call_operand.vmem [shape: s32[2,64], index: 1, kind: output, shape index: {}]
  $region1: #{squeeze.23} parent=0
    #allocation0 [shape = 'u8[4096]{0}', space=vmem, size = 0x1000, scoped, tag = 'scoped mem for output reshape']
    #allocation1 [shape = 'u8[4096]{0}', space=vmem, size = 0x1000, scoped, tag = 'scoped mem for input reshape']
    %s3 = sshll.u32 1, 1
    %s4 = ssub.s32 %s3, 1
    %v5 = vld [vmem:[%s0] sm:%s4]
    %6 = vst [vmem:[#allocation1] sm:%s4] %v5
    %v7 = vld [vmem:[#allocation1] sm:$0x1]
    %vm8 = vcmask 523264
    %9 = vst.msk [vmem:[#allocation0] sm:$0x1] %vm8, %v7
    %v10 = vld [vmem:[#allocation1] sm:$0x1]
    %11 = vrot.lane.b32.xlu0 %v10, 64
    %v12 = vpop.permute.xlu0 %11
    %vm13 = vcmask 523264
    %s14 = scalar_lea.vmem [#allocation0], 1
    %15 = vst.msk [vmem:[%s14] sm:$0x1] %vm13, %v12
    %s17 = sshll.u32 1, 2
    %s18 = ssub.s32 %s17, 1
    %v20 = vld [vmem:[#allocation0] sm:%s18]
    %s21 = sshll.u32 1, 2
    %s22 = ssub.s32 %s21, 1
    %23 = vst [vmem:[%s1] sm:%s22] %v20

// kernel: _forward_impl.4
$region0: #{_forward_impl.4}
  #allocation0 [shape = 'u32[]', space=smem, size = 0x4, offset = 0x4, fixed_abs, tag = 'smem constant byte address 0x4 - core index']
  #allocation1 [shape = 'u32[144,128]{1,0:T(1,128)}', space=vmem, size = 0x12000, scoped, tag = 'internal scratch']
  %s0 = inlined_call_operand.vmem [shape: f32[2,16,16], index: 0, kind: input, shape index: {}]
  %s1 = inlined_call_operand.vmem [shape: f32[2,16,16], index: 1, kind: output, shape index: {0}]
  %s2 = inlined_call_operand.vmem [shape: f32[2,16,16], index: 2, kind: output, shape index: {1}]
  %s3 = inlined_call_operand.vmem [shape: f32[2,16,16], index: 3, kind: output, shape index: {2}]
  %4 = xla_tuple %s1, %s2, %s3
  %s5 = sld [smem:[#allocation0]]
  $region53: #{_forward_impl.4} parent=0
    _
  %s7 = ssub.s32 1, %s5
  %s8 = scalar_select 0, %s7, %s5
  loop: start=0, step=1, limit=4
  $region2: #{_forward_impl.4} parent=0 // loop_pre_header
    _
  $region3: #{_forward_impl.4} parent=0 // loop_header
    %s10 = sphi 0, %s14
    %p11 = scmp.ge.s32.totalorder %s10, 4
    %s20 = sphi 0, %s22
    %s23 = sphi 0, %s20
    %s24 = sphi 0, %s23
    %s40 = sphi 0, %s24
    %s46 = sphi 0, %s48
    %s49 = sphi 0, %s46
    %s50 = sphi 0, %s49
    %s66 = sphi 0, %s50
    %s72 = sphi 0, %s74
    %s75 = sphi 0, %s72
    %s76 = sphi 0, %s75
    %s92 = sphi 0, %s76
    %s98 = sphi 0, %s100
    %s101 = sphi 0, %s98
    %s102 = sphi 0, %s101
    %s118 = sphi 0, %s102
  $region4: #{_forward_impl.4} parent=0 // loop_header_branch
    %13 = sbr.rel (%p11) target = $region8
  $region5: #{_forward_impl.4} parent=0 // loop_body
    %s15 = ssub.s32 %s10, 1
    %s16 = ssub.s32 %s10, 2
    %s17 = sadd.s32 %s10, 1
    %s18 = ssub.s32 %s10, %s17
    %p19 = scmp.eq.s32.totalorder %s18, 0
    %s21 = sadd.s32 %s20, 1
    %s22 = scalar_select %p19, %s20, %s21
    %p25 = pneg %p19
    %p26 = scmp.eq.s32.totalorder %s10, 1
    %p27 = por %p25, %p26
    %p28 = scmp.ne.s32.totalorder %s20, %s23
    %p29 = scmp.eq.s32.totalorder %s10, 0
    %p30 = por %p28, %p29
    %p31 = scmp.ne.s32.totalorder %s20, %s23
    %p32 = scmp.eq.s32.totalorder %s15, 1
    %p33 = por %p31, %p32
    %p34 = scmp.ne.s32.totalorder %s23, %s24
    %p35 = scmp.eq.s32.totalorder %s15, 0
    %p36 = por %p34, %p35
    %p37 = scmp.ne.s32.totalorder %s23, %s24
    %p38 = scmp.eq.s32.totalorder %s16, 1
    %p39 = por %p37, %p38
    %p41 = scmp.ne.s32.totalorder %s24, %s40
    %p42 = scmp.eq.s32.totalorder %s16, 0
    %p43 = por %p41, %p42
    %s44 = ssub.s32 %s10, %s17
    %p45 = scmp.eq.s32.totalorder %s44, 0
    %s47 = sadd.s32 %s46, 1
    %s48 = scalar_select %p45, %s46, %s47
    %p51 = pneg %p45
    %p52 = scmp.eq.s32.totalorder %s10, 1
    %p53 = por %p51, %p52
    %p54 = scmp.ne.s32.totalorder %s46, %s49
    %p55 = scmp.eq.s32.totalorder %s10, 0
    %p56 = por %p54, %p55
    %p57 = scmp.ne.s32.totalorder %s46, %s49
    %p58 = scmp.eq.s32.totalorder %s15, 1
    %p59 = por %p57, %p58
    %p60 = scmp.ne.s32.totalorder %s49, %s50
    %p61 = scmp.eq.s32.totalorder %s15, 0
    %p62 = por %p60, %p61
    %p63 = scmp.ne.s32.totalorder %s49, %s50
    %p64 = scmp.eq.s32.totalorder %s16, 1
    %p65 = por %p63, %p64
    %p67 = scmp.ne.s32.totalorder %s50, %s66
    %p68 = scmp.eq.s32.totalorder %s16, 0
    %p69 = por %p67, %p68
    %s70 = ssub.s32 %s10, %s17
    %p71 = scmp.eq.s32.totalorder %s70, 0
    %s73 = sadd.s32 %s72, 1
    %s74 = scalar_select %p71, %s72, %s73
    %p77 = pneg %p71
    %p78 = scmp.eq.s32.totalorder %s10, 1
    %p79 = por %p77, %p78
    %p80 = scmp.ne.s32.totalorder %s72, %s75
    %p81 = scmp.eq.s32.totalorder %s10, 0
    %p82 = por %p80, %p81
    %p83 = scmp.ne.s32.totalorder %s72, %s75
    %p84 = scmp.eq.s32.totalorder %s15, 1
    %p85 = por %p83, %p84
    %p86 = scmp.ne.s32.totalorder %s75, %s76
    %p87 = scmp.eq.s32.totalorder %s15, 0
    %p88 = por %p86, %p87
    %p89 = scmp.ne.s32.totalorder %s75, %s76
    %p90 = scmp.eq.s32.totalorder %s16, 1
    %p91 = por %p89, %p90
    %p93 = scmp.ne.s32.totalorder %s76, %s92
    %p94 = scmp.eq.s32.totalorder %s16, 0
    %p95 = por %p93, %p94
    %s96 = ssub.s32 %s10, %s17
    %p97 = scmp.eq.s32.totalorder %s96, 0
    %s99 = sadd.s32 %s98, 1
    %s100 = scalar_select %p97, %s98, %s99
    %p103 = pneg %p97
    %p104 = scmp.eq.s32.totalorder %s10, 1
    %p105 = por %p103, %p104
    %p106 = scmp.ne.s32.totalorder %s98, %s101
    %p107 = scmp.eq.s32.totalorder %s10, 0
    %p108 = por %p106, %p107
    %p109 = scmp.ne.s32.totalorder %s98, %s101
    %p110 = scmp.eq.s32.totalorder %s15, 1
    %p111 = por %p109, %p110
    %p112 = scmp.ne.s32.totalorder %s101, %s102
    %p113 = scmp.eq.s32.totalorder %s15, 0
    %p114 = por %p112, %p113
    %p115 = scmp.ne.s32.totalorder %s101, %s102
    %p116 = scmp.eq.s32.totalorder %s16, 1
    %p117 = por %p115, %p116
    %p119 = scmp.ne.s32.totalorder %s102, %s118
    %p120 = scmp.eq.s32.totalorder %s16, 0
    %p121 = por %p119, %p120
    %p122 = scmp.le.s32.totalorder 1, %s10
    %p123 = scmp.lt.s32.totalorder %s10, 3
    %p124 = pnand %p122, %p123
    %p125 = pneg %p124
    // Predicated region
    $region9: #{_forward_impl.4} parent=5 // pred_check
      _
    $region10: #{_forward_impl.4} parent=5 // pred_check_branch
      %127 = sbr.rel (%p124) target = $region12
    $region11: #{_forward_impl.4} parent=5 // pred_region
      %s128 = ssub.s32 %s10, 1
    $region12: #{_forward_impl.4} parent=5 // pred_fallthru
      _
    %p129 = scmp.lt.s32.totalorder %s10, 2
    // Predicated region
    $region13: #{_forward_impl.4} parent=5 // pred_check
      %p130 = pneg %p129
    $region14: #{_forward_impl.4} parent=5 // pred_check_branch
      %132 = sbr.rel (%p130) target = $region16
    $region15: #{_forward_impl.4} parent=5 // pred_region
      // Predicated region
      $region17: #{_forward_impl.4} parent=15 // pred_check
        %p133 = pneg %p30
      $region18: #{_forward_impl.4} parent=15 // pred_check_branch
        %135 = sbr.rel (%p133) target = $region20
      $region19: #{_forward_impl.4} parent=15 // pred_region
        %p136 = scmp.lt.s32.totalorder %s10, 1
        %s137 = scalar_select %p136, %s10, 1
        %s138 = smul.addr %s137, 2
        %s139 = smul.addr %s138, 8
        %s140 = scalar_lea.vmem %s0, %s139
      $region20: #{_forward_impl.4} parent=15 // pred_fallthru
        _
    $region16: #{_forward_impl.4} parent=5 // pred_fallthru
      _
    %p141 = scmp.le.s32.totalorder 1, %s10
    %p142 = scmp.lt.s32.totalorder %s10, 3
    %p143 = pnand %p141, %p142
    %p144 = pneg %p143
    // Predicated region
    $region21: #{_forward_impl.4} parent=5 // pred_check
      _
    $region22: #{_forward_impl.4} parent=5 // pred_check_branch
      %146 = sbr.rel (%p143) target = $region24
    $region23: #{_forward_impl.4} parent=5 // pred_region
      %s147 = ssub.s32 %s10, 1
      %p148 = scmp.lt.s32.totalorder %s15, 1
      %s149 = scalar_select %p148, %s15, 1
      %s150 = smul.addr %s149, 2
      %s151 = smul.addr %s150, 8
      %s152 = scalar_lea.vmem %s0, %s151
      %p153 = pneg %p36
      %p154 = pneg %p33
      %p155 = pneg %p62
      %p156 = pneg %p59
      %p157 = scmp.lt.s32.totalorder %s15, 1
      %s158 = scalar_select %p157, %s15, 1
      %s159 = smul.addr %s158, 2
      %s160 = smul.addr %s159, 8
      %s161 = scalar_lea.vmem %s1, %s160
      %p162 = pneg %p88
      %p163 = pneg %p85
      %p164 = scmp.lt.s32.totalorder %s15, 1
      %s165 = scalar_select %p164, %s15, 1
      %s166 = smul.addr %s165, 2
      %s167 = smul.addr %s166, 8
      %s168 = scalar_lea.vmem %s2, %s167
      %p169 = pneg %p114
      %p170 = pneg %p111
      %p171 = scmp.lt.s32.totalorder %s15, 1
      %s172 = scalar_select %p171, %s15, 1
      %s173 = smul.addr %s172, 2
      %s174 = smul.addr %s173, 8
      %s175 = scalar_lea.vmem %s3, %s174
      %p176 = scmp.lt.s32.totalorder %s15, 1
      %s177 = scalar_select %p176, %s15, 1
      %s178 = smul.addr %s177, 2
      %s179 = smul.addr %s178, 8
      %s180 = scalar_lea.vmem %s0, %s179
      %p181 = scmp.lt.s32.totalorder %s15, 1
      %s182 = scalar_select %p181, %s15, 1
      %s183 = smul.addr %s182, 2
      %s184 = smul.addr %s183, 8
      %s185 = scalar_lea.vmem %s1, %s184
      %p186 = scmp.lt.s32.totalorder %s15, 1
      %s187 = scalar_select %p186, %s15, 1
      %s188 = smul.addr %s187, 2
      %s189 = smul.addr %s188, 8
      %s190 = scalar_lea.vmem %s2, %s189
      %p191 = scmp.lt.s32.totalorder %s15, 1
      %s192 = scalar_select %p191, %s15, 1
      %s193 = smul.addr %s192, 2
      %s194 = smul.addr %s193, 8
      %s195 = scalar_lea.vmem %s3, %s194
      %v196 = vld [vmem:[%s180] sm:$0xff]
      %v197 = vld [vmem:[%s180 + $0x8] sm:$0xff]
      %v199 = vrot.slane %v197, 7
      %vm202 = vcmask 1040384
      %v203 = vrot.slane %v196, 7
      %v204 = vsel %vm202, %v203, %v199
      %v207 = vsel %vm202, %v199, %v203
      %vm208 = vcmask 1046528
      %v209 = vrot.slane %v196, 1
      %v210 = vrot.slane %v197, 1
      %v211 = vsel %vm208, %v209, %v210
      %v215 = vsel %vm208, %v210, %v209
      %v216 = vmul.f32 %v196, 2.0
      %v217 = vmul.f32 %v197, 2.0
      %v218 = vadd.f32 %v207, %v216
      %v219 = vadd.f32 %v204, %v217
      %v220 = vadd.f32 %v218, %v211
      %v221 = vadd.f32 %v219, %v215
      %v222 = vsub.f32 %v207, %v211
      %v223 = vsub.f32 %v204, %v215
      %226 = vrot.lane.b32.xlu0 %v220, 127
      %v227 = vpop.permute.xlu0 %226
      %228 = vrot.lane.b32.xlu0 %v221, 127
      %v229 = vpop.permute.xlu0 %228
      %232 = vrot.lane.b32.xlu0 %v220, 15
      %v233 = vpop.permute.xlu0 %232
      %234 = vrot.lane.b32.xlu0 %v221, 15
      %v235 = vpop.permute.xlu0 %234
      %vm238 = vcmask 121856
      %v239 = vsel %vm238, %v227, %v233
      %v240 = vsel %vm238, %v229, %v235
      %241 = vrot.lane.b32.xlu0 %v220, 113
      %v242 = vpop.permute.xlu0 %241
      %243 = vrot.lane.b32.xlu0 %v221, 113
      %v244 = vpop.permute.xlu0 %243
      %247 = vrot.lane.b32.xlu0 %v220, 1
      %v248 = vpop.permute.xlu0 %247
      %249 = vrot.lane.b32.xlu0 %v221, 1
      %v250 = vpop.permute.xlu0 %249
      %vm253 = vcmask 7168
      %v254 = vsel %vm253, %v242, %v248
      %v255 = vsel %vm253, %v244, %v250
      %v256 = vsub.f32 %v239, %v254
      %v257 = vsub.f32 %v240, %v255
      %260 = vrot.lane.b32.xlu0 %v222, 113
      %v261 = vpop.permute.xlu0 %260
      %262 = vrot.lane.b32.xlu0 %v223, 113
      %v263 = vpop.permute.xlu0 %262
      %266 = vrot.lane.b32.xlu0 %v222, 1
      %v267 = vpop.permute.xlu0 %266
      %268 = vrot.lane.b32.xlu0 %v223, 1
      %v269 = vpop.permute.xlu0 %268
      %v272 = vsel %vm253, %v261, %v267
      %v273 = vsel %vm253, %v263, %v269
      %v274 = vmul.f32 %v222, 2.0
      %v275 = vmul.f32 %v223, 2.0
      %v276 = vadd.f32 %v272, %v274
      %v277 = vadd.f32 %v273, %v275
      %278 = vrot.lane.b32.xlu0 %v222, 127
      %v279 = vpop.permute.xlu0 %278
      %280 = vrot.lane.b32.xlu0 %v223, 127
      %v281 = vpop.permute.xlu0 %280
      %284 = vrot.lane.b32.xlu0 %v222, 15
      %v285 = vpop.permute.xlu0 %284
      %286 = vrot.lane.b32.xlu0 %v223, 15
      %v287 = vpop.permute.xlu0 %286
      %v290 = vsel %vm238, %v279, %v285
      %v291 = vsel %vm238, %v281, %v287
      %v292 = vadd.f32 %v276, %v290
      %v293 = vadd.f32 %v277, %v291
      %v294 = vlaneseq
      %v295 = vshrl.u32 %v294, 7
      %v296 = vadd.s32 %v295, 8
      %v297 = vlaneseq
      %v298 = vand.u32 %v297, 127
      %vm299 = vcmp.ge.s32.totalorder %v295, 1
      %vm300 = vcmp.ge.s32.totalorder %v296, 1
      %vm301 = vcmp.le.s32.totalorder %v295, 14
      %vm302 = vcmp.le.s32.totalorder %v296, 14
      %vm303 = vmand %vm299, %vm301
      %vm304 = vmand %vm300, %vm302
      %vm305 = vcmp.ge.s32.totalorder %v298, 1
      %vm306 = vmand %vm303, %vm305
      %vm307 = vmand %vm304, %vm305
      %vm308 = vcmp.le.s32.totalorder %v298, 14
      %vm309 = vmand %vm306, %vm308
      %vm310 = vmand %vm307, %vm308
      %v311 = vsel %vm309, %v256, 0.0
      %v312 = vsel %vm310, %v257, 0.0
      %v313 = vsel %vm309, %v292, 0.0
      %v314 = vsel %vm310, %v293, 0.0
      %v315 = vmul.f32 %v311, %v311
      %v316 = vmul.f32 %v312, %v312
      %v317 = vmul.f32 %v313, %v313
      %v318 = vmul.f32 %v314, %v314
      %v319 = vadd.f32 %v315, %v317
      %v320 = vadd.f32 %v316, %v318
      %v321 = vrsqrt.pop %v319
      %v322 = vmul.f32 %v319, %v321
      %vm323 = vcmp.eq.f32.partialorder %v319, inf
      %v324 = vsel %vm323, %v319, %v322
      %vm325 = vcmp.eq.f32.partialorder %v319, 0.0
      %v326 = vand.u32 %v319, 2147483648
      %v327 = vsel %vm325, %v326, %v324
      %v328 = vrsqrt.pop %v320
      %v329 = vmul.f32 %v320, %v328
      %vm330 = vcmp.eq.f32.partialorder %v320, inf
      %v331 = vsel %vm330, %v320, %v329
      %vm332 = vcmp.eq.f32.partialorder %v320, 0.0
      %v333 = vand.u32 %v320, 2147483648
      %v334 = vsel %vm332, %v333, %v331
      %v335 = vadd.f32 %v327, 1e-12
      %v336 = vadd.f32 %v334, 1e-12
      %v337 = vrcp.pop %v335
      %v338 = vrcp.pop %v336
      %vm339 = vcmask 130048
      %340 = vst.msk [vmem:[%s185] sm:$0xff] %vm339, %v327
      %341 = vst.msk [vmem:[%s185 + $0x8] sm:$0xff] %vm339, %v334
      %v342 = vand.u32 2147483647, %v311
      %v343 = vand.u32 2147483647, %v312
      %v344 = vmul.f32 %v342, %v337
      %v345 = vmul.f32 %v343, %v338
      %346 = vst.msk [vmem:[%s190] sm:$0xff] %vm339, %v344
      %347 = vst.msk [vmem:[%s190 + $0x8] sm:$0xff] %vm339, %v345
      %v348 = vand.u32 2147483647, %v313
      %v349 = vand.u32 2147483647, %v314
      %v350 = vmul.f32 %v348, %v337
      %v351 = vmul.f32 %v349, %v338
      %352 = vst.msk [vmem:[%s195] sm:$0xff] %vm339, %v350
      %353 = vst.msk [vmem:[%s195 + $0x8] sm:$0xff] %vm339, %v351
      %p354 = scmp.lt.s32.totalorder %s15, 1
      %s355 = scalar_select %p354, %s15, 1
      %s356 = smul.addr %s355, 2
      %s357 = smul.addr %s356, 8
      %s358 = scalar_lea.vmem %s1, %s357
      %p359 = scmp.lt.s32.totalorder %s15, 1
      %s360 = scalar_select %p359, %s15, 1
      %s361 = smul.addr %s360, 2
      %s362 = smul.addr %s361, 8
      %s363 = scalar_lea.vmem %s2, %s362
      %p364 = scmp.lt.s32.totalorder %s15, 1
      %s365 = scalar_select %p364, %s15, 1
      %s366 = smul.addr %s365, 2
      %s367 = smul.addr %s366, 8
      %s368 = scalar_lea.vmem %s3, %s367
      // Predicated region
      $region25: #{_forward_impl.4} parent=23 // pred_check
        %p369 = pneg %p59
      $region26: #{_forward_impl.4} parent=23 // pred_check_branch
        %371 = sbr.rel (%p369) target = $region28
      $region27: #{_forward_impl.4} parent=23 // pred_region
        _
      $region28: #{_forward_impl.4} parent=23 // pred_fallthru
        _
      // Predicated region
      $region29: #{_forward_impl.4} parent=23 // pred_check
        %p372 = pneg %p85
      $region30: #{_forward_impl.4} parent=23 // pred_check_branch
        %374 = sbr.rel (%p372) target = $region32
      $region31: #{_forward_impl.4} parent=23 // pred_region
        _
      $region32: #{_forward_impl.4} parent=23 // pred_fallthru
        _
      // Predicated region
      $region33: #{_forward_impl.4} parent=23 // pred_check
        %p375 = pneg %p111
      $region34: #{_forward_impl.4} parent=23 // pred_check_branch
        %377 = sbr.rel (%p375) target = $region36
      $region35: #{_forward_impl.4} parent=23 // pred_region
        _
      $region36: #{_forward_impl.4} parent=23 // pred_fallthru
        _
    $region24: #{_forward_impl.4} parent=5 // pred_fallthru
      _
    %p378 = scmp.le.s32.totalorder 2, %s10
    // Predicated region
    $region37: #{_forward_impl.4} parent=5 // pred_check
      %p379 = pneg %p378
    $region38: #{_forward_impl.4} parent=5 // pred_check_branch
      %381 = sbr.rel (%p379) target = $region40
    $region39: #{_forward_impl.4} parent=5 // pred_region
      %s382 = ssub.s32 %s10, 2
      // Predicated region
      $region41: #{_forward_impl.4} parent=39 // pred_check
        %p383 = pneg %p65
      $region42: #{_forward_impl.4} parent=39 // pred_check_branch
        %385 = sbr.rel (%p383) target = $region44
      $region43: #{_forward_impl.4} parent=39 // pred_region
        %p386 = scmp.lt.s32.totalorder %s16, 1
        %s387 = scalar_select %p386, %s16, 1
        %s388 = smul.addr %s387, 2
        %s389 = smul.addr %s388, 8
        %s390 = scalar_lea.vmem %s1, %s389
      $region44: #{_forward_impl.4} parent=39 // pred_fallthru
        _
      // Predicated region
      $region45: #{_forward_impl.4} parent=39 // pred_check
        %p391 = pneg %p91
      $region46: #{_forward_impl.4} parent=39 // pred_check_branch
        %393 = sbr.rel (%p391) target = $region48
      $region47: #{_forward_impl.4} parent=39 // pred_region
        %p394 = scmp.lt.s32.totalorder %s16, 1
        %s395 = scalar_select %p394, %s16, 1
        %s396 = smul.addr %s395, 2
        %s397 = smul.addr %s396, 8
        %s398 = scalar_lea.vmem %s2, %s397
      $region48: #{_forward_impl.4} parent=39 // pred_fallthru
        _
      // Predicated region
      $region49: #{_forward_impl.4} parent=39 // pred_check
        %p399 = pneg %p117
      $region50: #{_forward_impl.4} parent=39 // pred_check_branch
        %401 = sbr.rel (%p399) target = $region52
      $region51: #{_forward_impl.4} parent=39 // pred_region
        %p402 = scmp.lt.s32.totalorder %s16, 1
        %s403 = scalar_select %p402, %s16, 1
        %s404 = smul.addr %s403, 2
        %s405 = smul.addr %s404, 8
        %s406 = scalar_lea.vmem %s3, %s405
      $region52: #{_forward_impl.4} parent=39 // pred_fallthru
        _
    $region40: #{_forward_impl.4} parent=5 // pred_fallthru
      _
  $region6: #{_forward_impl.4} parent=0 // loop_footer
    %s14 = sadd.s32 1, %s10
  $region7: #{_forward_impl.4} parent=0 // loop_footer_branch
    %9 = sbr.rel target = $region3
  $region8: #{_forward_impl.4} parent=0 // loop_exit
    _

// kernel: custom-call.34
$region0: #{custom-call.34}
  %s0 = inlined_call_operand.vmem [shape: u32[2,128], index: 0, kind: output, shape index: {}]

// kernel: _forward_impl.5
$region0: #{_forward_impl.5}
  #allocation0 [shape = 'u32[]', space=smem, size = 0x4, offset = 0x4, fixed_abs, tag = 'smem constant byte address 0x4 - core index']
  #allocation1 [shape = 'u32[144,128]{1,0:T(1,128)}', space=vmem, size = 0x12000, scoped, tag = 'internal scratch']
  #allocation2 [shape = 'f32[1]{0:T(128)}', space=smem, size = 0x200, scoped, tag = 'scratch operand']
  %s0 = inlined_call_operand.vmem [shape: f32[2,256], index: 0, kind: input, shape index: {}]
  %s1 = inlined_call_operand.vmem [shape: f32[2,256], index: 1, kind: input, shape index: {}]
  %s2 = inlined_call_operand.vmem [shape: f32[2,256], index: 2, kind: input, shape index: {}]
  %s3 = inlined_call_operand.vmem [shape: f32[2,256], index: 3, kind: input, shape index: {}]
  %s4 = inlined_call_operand.vmem [shape: f32[2,256], index: 4, kind: input, shape index: {}]
  %s5 = inlined_call_operand.vmem [shape: f32[2,256], index: 5, kind: input, shape index: {}]
  %s6 = inlined_call_operand.hbm [shape: f32[1], index: 6, kind: output, shape index: {}]
  %s7 = sld [smem:[#allocation0]]
  $region38: #{_forward_impl.5} parent=0
    _
  %s9 = ssub.s32 1, %s7
  %s10 = scalar_select 0, %s9, %s7
  $region1: #{_forward_impl.5} parent=0
    #allocation3 [shape = 'u8[512]{0}', space=smem, size = 0x200, scoped, tag = 'output window, operand 0, single buffered']
    #allocation4 [shape = 's32[1]{0}', space=sflag, size = 0x4, scoped, tag = 'scoped memory for _forward_impl.5']
    %11 = vsyncpa [#allocation4], 0
    // Predicated region
    $region2: #{_forward_impl.5} parent=1 // pred_check
      _
    $region3: #{_forward_impl.5} parent=1 // pred_check_branch
      %13 = sbr.rel (0) target = $region5
    $region4: #{_forward_impl.5} parent=1 // pred_region
      _
    $region5: #{_forward_impl.5} parent=1 // pred_fallthru
      _
    // Predicated region
    $region6: #{_forward_impl.5} parent=1 // pred_check
      _
    $region7: #{_forward_impl.5} parent=1 // pred_check_branch
      %15 = sbr.rel (0) target = $region9
    $region8: #{_forward_impl.5} parent=1 // pred_region
      _
    $region9: #{_forward_impl.5} parent=1 // pred_fallthru
      _
    // Predicated region
    $region10: #{_forward_impl.5} parent=1 // pred_check
      _
    $region11: #{_forward_impl.5} parent=1 // pred_check_branch
      %17 = sbr.rel (0) target = $region13
    $region12: #{_forward_impl.5} parent=1 // pred_region
      _
    $region13: #{_forward_impl.5} parent=1 // pred_fallthru
      _
    // Predicated region
    $region14: #{_forward_impl.5} parent=1 // pred_check
      _
    $region15: #{_forward_impl.5} parent=1 // pred_check_branch
      %19 = sbr.rel (0) target = $region17
    $region16: #{_forward_impl.5} parent=1 // pred_region
      _
    $region17: #{_forward_impl.5} parent=1 // pred_fallthru
      _
    // Predicated region
    $region18: #{_forward_impl.5} parent=1 // pred_check
      _
    $region19: #{_forward_impl.5} parent=1 // pred_check_branch
      %21 = sbr.rel (0) target = $region21
    $region20: #{_forward_impl.5} parent=1 // pred_region
      _
    $region21: #{_forward_impl.5} parent=1 // pred_fallthru
      _
    // Predicated region
    $region22: #{_forward_impl.5} parent=1 // pred_check
      _
    $region23: #{_forward_impl.5} parent=1 // pred_check_branch
      %23 = sbr.rel (0) target = $region25
    $region24: #{_forward_impl.5} parent=1 // pred_region
      _
    $region25: #{_forward_impl.5} parent=1 // pred_fallthru
      _
    %p24 = scmp.eq.s32.totalorder 0, 0
    // Predicated region
    $region26: #{_forward_impl.5} parent=1 // pred_check
      %p25 = pneg %p24
    $region27: #{_forward_impl.5} parent=1 // pred_check_branch
      %27 = sbr.rel (%p25) target = $region29
    $region28: #{_forward_impl.5} parent=1 // pred_region
      %s28 = scalar_lea.smem [#allocation2], 0
      %29 = sst [smem:[%s28]] 0.0
    $region29: #{_forward_impl.5} parent=1 // pred_fallthru
      _
    %v30 = vld [vmem:[%s0] sm:$0xf]
    %v31 = vld [vmem:[%s1] sm:$0xf]
    %v32 = vld [vmem:[%s2] sm:$0xf]
    %v33 = vld [vmem:[%s3] sm:$0xf]
    %v34 = vld [vmem:[%s4] sm:$0xf]
    %v35 = vld [vmem:[%s5] sm:$0xf]
    %v36 = vmul.f32 %v34, %v35
    %v37 = vadd.f32 %v32, 1e-06
    %v38 = vadd.f32 %v33, 1e-06
    %v39 = vrcp.pop %v38
    %v40 = vmul.f32 %v37, %v39
    %vm41 = vcmp.lt.f32.partialorder %v40, 1.15
    %vm42 = vcmp.gt.f32.partialorder %v40, 0.8695652
    %vm43 = vmand %vm41, %vm42
    %v44 = vsel %vm43, 1, 0
    %v45 = vcvt.s32.f32 %v44
    %vm46 = vcmp.ge.f32.partialorder %v40, 1.15
    %v47 = vsel %vm46, 1.0, 0.0
    %vm48 = vcmp.le.f32.partialorder %v40, 0.8695652
    %v49 = vsel %vm48, -1.0, 0.0
    %v50 = vadd.f32 %v47, %v49
    %v51 = vsub.f32 %v30, %v31
    %v52 = vmul.f32 %v51, %v51
    %v53 = vmul.f32 %v52, %v45
    %v54 = vmul.f32 %v53, %v36
    %v55 = vsub.f32 %v31, %v30
    %v56 = vmul.f32 %v55, %v50
    %v57 = vmax.f32 %v56, 0.0
    %v58 = vand.u32 2147483647, %v56
    %v59 = vsub.f32 0.0, %v58
    %v60 = vmul.f32 %v59, 1.442695
    %v61 = vpow.pop %v60
    %v62 = vadd.f32 %v61, 1.0
    %v63 = vlog2.pop %v62
    %v64 = vmul.f32 %v63, 0.6931472
    %v65 = vadd.f32 %v57, %v64
    %v66 = vsub.f32 1.0, %v45
    %v67 = vmul.f32 %v65, %v66
    %v68 = vmul.f32 %v67, %v36
    %s69 = sld [smem:[#allocation2]]
    %v70 = vadd.f32 %v54, %v68
    %v73 = vunpack.c.l.s4 1983009808
    %v74 = vunpack.c.0.s8 %v73
    %v75 = vlaneseq
    %v76 = vshrl.u32 %v75, 7
    %v77 = vsub.s32 %v74, %v76
    %v78 = vrot.slane %v70, %v77
    %v79 = vcombine.high %v78, %v78
    %vm82 = vcmask 1041408
    %v83 = vsel %vm82, %v78, 0.0
    %v84 = vsel %vm82, %v79, 0.0
    %v85 = vadd.f32 %v83, %v84
    %86 = vadd.xlane.f32.xlu0 %v85
    %v87 = vpop.xlane.xlu0 %86
    %v88 = vrot.slane %v87, 4
    %v89 = vadd.f32 %v87, %v88
    %v90 = vrot.slane %v89, 2
    %v91 = vadd.f32 %v89, %v90
    %v92 = vrot.slane %v91, 1
    %v93 = vadd.f32 %v91, %v92
    %s94 = vtos %v93
    %s95 = sadd.f32 %s69, %s94
    %s96 = scalar_lea.smem [#allocation2], 0
    %97 = sst [smem:[%s96]] %s95
    %s98 = sld [smem:[#allocation2]]
    %s99 = smul.f32 %s98, 0.001953125
    %s100 = scalar_lea.smem [#allocation3], 0
    %101 = sst [smem:[%s100]] %s99
    // Predicated region
    $region30: #{_forward_impl.5} parent=1 // pred_check
      _
    $region31: #{_forward_impl.5} parent=1 // pred_check_branch
      %103 = sbr.rel (0) target = $region33
    $region32: #{_forward_impl.5} parent=1 // pred_region
      %s105 = ssub.s32 16, 16
      %106 = vsyncadd [#allocation4], %s105
      %109 = dma.smem_to_hbm [#allocation3], 16, %s6, [#allocation4]
    $region33: #{_forward_impl.5} parent=1 // pred_fallthru
      _
    // Predicated region
    $region34: #{_forward_impl.5} parent=1 // pred_check
      _
    $region35: #{_forward_impl.5} parent=1 // pred_check_branch
      %111 = sbr.rel (0) target = $region37
    $region36: #{_forward_impl.5} parent=1 // pred_region
      %112 = dma.done [#allocation4], 16
    $region37: #{_forward_impl.5} parent=1 // pred_fallthru
      _
    %113 = sfence
    %114 = vsyncpa [#allocation4], 1

</llo_original>
